<compile_context>
chip_gen: v7x
topology: tpu7x:2x2x1
jax: 0.10.0
libtpu: 0.0.40
codegen_flags: <defaults>
</compile_context>

<pallas_src>
import jax
import jax.numpy as jnp
from jax.experimental import pallas as pl
from jax.experimental.pallas import tpu as pltpu


def _round_up(n, m):
    return ((n + m - 1) // m) * m


def _pad_to(a, axis, target):
    pad = target - a.shape[axis]
    if pad == 0:
        return a
    widths = [(0, 0)] * a.ndim
    widths[axis] = (0, pad)
    return jnp.pad(a, widths)


def mlp_kernel(x_ref, w1_ref, b1_ref, w2_ref, b2_ref, o_ref):
    # x: (tb, D_in) f32 ; w1: (D_in, Hp) bf16 ; b1: (1, Hp) f32
    # w2: (Hp, O) bf16  ; b2: (1, O)  f32     ; o: (tb, O) f32
    x = x_ref[...].astype(jnp.bfloat16)                               # in-kernel cast
    h = jnp.dot(x, w1_ref[...], preferred_element_type=jnp.float32)   # MXU, f32 acc
    h = jnp.maximum(h + b1_ref[...], 0.0)                             # f32 bias+ReLU (VPU)
    y = jnp.dot(h.astype(jnp.bfloat16), w2_ref[...],
                preferred_element_type=jnp.float32)                   # MXU, f32 acc
    o_ref[...] = (y + b2_ref[...]).astype(o_ref.dtype)


def prepare_simple_net_params(w1, b1, w2, b2):
    """One-time pad (hidden dim -> lane-dense multiple of 128) + bf16 cast.

    Zero-padding the hidden dim preserves semantics: padded hidden units see
    relu(0 + 0) = 0 and the corresponding zero rows of w2 contribute 0.
    The output dim O is NOT padded (output block uses the full array dim).
    """
    H = w1.shape[1]
    O = w2.shape[1]
    Hp = _round_up(H, 128)
    w1p = _pad_to(w1, 1, Hp).astype(jnp.bfloat16)
    b1p = _pad_to(b1.reshape(1, H), 1, Hp).astype(jnp.float32)
    w2p = _pad_to(w2, 0, Hp).astype(jnp.bfloat16)
    b2p = b2.reshape(1, O).astype(jnp.float32)
    return (w1p, b1p, w2p, b2p)


def _grid_vmem_bytes(block_b, d_in, hp, o):
    # double-buffered x/out tiles + double-buffered (tiny) weights + hidden
    # intermediate (f32 + bf16 copy for the second matmul).
    x_tile = block_b * d_in * 4
    o_tile = block_b * o * 4
    weights = d_in * hp * 2 + hp * 4 + hp * o * 2 + o * 4
    interm = block_b * hp * (4 + 2)
    return 2 * (x_tile + o_tile + weights) + interm


def simple_net_forward(x, params, *, block_b=1024):
    """y = relu(x @ w1 + b1) @ w2 + b2 in one Pallas kernel."""
    w1p, b1p, w2p, b2p = params
    B, D_in = x.shape
    Hp = w1p.shape[1]
    O = w2p.shape[1]

    if B <= block_b:
        # Small batch: single invocation, no grid, no pipeline. Full arrays
        # live in VMEM for the duration of the kernel.
        vmem = pl.BlockSpec(memory_space=pltpu.MemorySpace.VMEM)
        return pl.pallas_call(
            mlp_kernel,
            out_shape=jax.ShapeDtypeStruct((B, O), jnp.float32),
            in_specs=[vmem] * 5,
            out_specs=vmem,
        )(x, w1p, b1p, w2p, b2p)

    # Larger batch: ragged grid over the batch axis (no padding, no post-slice).
    # Force an even block count so v7x's two TensorCores stay balanced.
    nblocks = pl.cdiv(B, block_b)
    if nblocks % 2:
        nblocks += 1
    block_b = _round_up(pl.cdiv(B, nblocks), 8)   # sublane-aligned tile
    nblocks = pl.cdiv(B, block_b)

    compiler_kwargs = dict(dimension_semantics=("parallel",))
    est = _grid_vmem_bytes(block_b, D_in, Hp, O)
    if est > 12 * 1024 * 1024:  # would approach v5e's 16 MiB default scoped VMEM
        compiler_kwargs["vmem_limit_bytes"] = min(2 * est, 60 * 1024 * 1024)

    return pl.pallas_call(
        mlp_kernel,
        out_shape=jax.ShapeDtypeStruct((B, O), jnp.float32),
        grid=(nblocks,),
        in_specs=[
            pl.BlockSpec((block_b, D_in), lambda i: (i, 0)),
            pl.BlockSpec((D_in, Hp), lambda i: (0, 0)),   # weights VMEM-resident
            pl.BlockSpec((1, Hp), lambda i: (0, 0)),
            pl.BlockSpec((Hp, O), lambda i: (0, 0)),
            pl.BlockSpec((1, O), lambda i: (0, 0)),
        ],
        out_specs=pl.BlockSpec((block_b, O), lambda i: (i, 0)),
        compiler_params=pltpu.CompilerParams(**compiler_kwargs),
    )(x, w1p, b1p, w2p, b2p)


def _reference(x, w1, b1, w2, b2):
    # Mirrors the kernel's dtype choices: bf16-rounded MXU operands, f32 math.
    xf = x.astype(jnp.bfloat16).astype(jnp.float32)
    w1f = w1.astype(jnp.bfloat16).astype(jnp.float32)
    w2f = w2.astype(jnp.bfloat16).astype(jnp.float32)
    h = jnp.maximum(xf @ w1f + b1.reshape(1, -1), 0.0)
    hf = h.astype(jnp.bfloat16).astype(jnp.float32)
    return hf @ w2f + b2.reshape(1, -1)


if __name__ == "__main__":
    # Shapes implied by SimpleNet(input_dim=32, hidden_dim=64, output_dim=16).
    D_in, H, O = 32, 64, 16
    key = jax.random.PRNGKey(0)
    k_x, k_w1, k_b1, k_w2, k_b2, k_x2 = jax.random.split(key, 6)

    # PyTorch-style U(-1/sqrt(fan_in), 1/sqrt(fan_in)) init.
    lim1 = 1.0 / (D_in ** 0.5)
    lim2 = 1.0 / (H ** 0.5)
    w1 = jax.random.uniform(k_w1, (D_in, H), jnp.float32, -lim1, lim1)
    b1 = jax.random.uniform(k_b1, (H,), jnp.float32, -lim1, lim1)
    w2 = jax.random.uniform(k_w2, (H, O), jnp.float32, -lim2, lim2)
    b2 = jax.random.uniform(k_b2, (O,), jnp.float32, -lim2, lim2)

    # One-time weight preparation (padding + bf16 cast), reused across calls.
    params = prepare_simple_net_params(w1, b1, w2, b2)
    jax.block_until_ready(params)

    # Case 1: tiny batch -> single-shot (no grid) path.
    x_small = jax.random.normal(k_x, (8, D_in), dtype=jnp.float32)
    out_small = simple_net_forward(x_small, params)
    jax.block_until_ready(out_small)
    ref_small = _reference(x_small, w1, b1, w2, b2)
    assert out_small.shape == (8, O)
    assert jnp.allclose(out_small, ref_small, atol=1e-2, rtol=1e-2)

    # Case 2: larger, non-multiple batch -> ragged batch-tiled "parallel" path
    # (block_b overridden small here just to exercise the gridded path).
    x_big = jax.random.normal(k_x2, (500, D_in), dtype=jnp.float32)
    out_big = simple_net_forward(x_big, params, block_b=256)
    jax.block_until_ready(out_big)
    ref_big = _reference(x_big, w1, b1, w2, b2)
    assert out_big.shape == (500, O)
    assert jnp.allclose(out_big, ref_big, atol=1e-2, rtol=1e-2)

    print("KERNEL_OK")
</pallas_src>

<mosaic_0001>
module attributes {stable_mosaic.version = 11 : i64} {
  func.func @mlp_kernel(%arg0: memref<8x32xf32, #tpu.memory_space<vmem>>, %arg1: memref<32x128xbf16, #tpu.memory_space<vmem>>, %arg2: memref<1x128xf32, #tpu.memory_space<vmem>>, %arg3: memref<128x16xbf16, #tpu.memory_space<vmem>>, %arg4: memref<1x16xf32, #tpu.memory_space<vmem>>, %arg5: memref<8x16xf32, #tpu.memory_space<vmem>>) attributes {dimension_semantics = [], scalar_prefetch = 0 : i64, scratch_operands = 0 : i64, tpu.core_type = #tpu.core_type<tc>} {
    %c0 = arith.constant 0 : index
    %c0_0 = arith.constant 0 : index
    %0 = vector.load %arg0[%c0, %c0_0] : memref<8x32xf32, #tpu.memory_space<vmem>>, vector<8x32xf32>
    %1 = arith.truncf %0 : vector<8x32xf32> to vector<8x32xbf16>
    %c0_1 = arith.constant 0 : index
    %c0_2 = arith.constant 0 : index
    %2 = vector.load %arg1[%c0_1, %c0_2] : memref<32x128xbf16, #tpu.memory_space<vmem>>, vector<32x128xbf16>
    %cst = arith.constant dense<0.000000e+00> : vector<8x128xf32>
    %3 = tpu.matmul %1, %2, %cst {dimension_numbers = #tpu.dot_dimension_numbers<[1], [0], [0], [1], [0, 0, 1, 1], [], []>} : vector<8x32xbf16>, vector<32x128xbf16>, vector<8x128xf32> -> vector<8x128xf32>
    %c0_3 = arith.constant 0 : index
    %c0_4 = arith.constant 0 : index
    %4 = vector.load %arg2[%c0_3, %c0_4] : memref<1x128xf32, #tpu.memory_space<vmem>>, vector<1x128xf32>
    %5 = vector.broadcast %4 : vector<1x128xf32> to vector<8x128xf32>
    %6 = arith.addf %3, %5 : vector<8x128xf32>
    %cst_5 = arith.constant 0.000000e+00 : f32
    %7 = vector.broadcast %cst_5 : f32 to vector<8x128xf32>
    %8 = arith.maximumf %6, %7 : vector<8x128xf32>
    %9 = arith.truncf %8 : vector<8x128xf32> to vector<8x128xbf16>
    %c0_6 = arith.constant 0 : index
    %c0_7 = arith.constant 0 : index
    %10 = vector.load %arg3[%c0_6, %c0_7] : memref<128x16xbf16, #tpu.memory_space<vmem>>, vector<128x16xbf16>
    %cst_8 = arith.constant dense<0.000000e+00> : vector<8x16xf32>
    %11 = tpu.matmul %9, %10, %cst_8 {dimension_numbers = #tpu.dot_dimension_numbers<[1], [0], [0], [1], [0, 0, 1, 1], [], []>} : vector<8x128xbf16>, vector<128x16xbf16>, vector<8x16xf32> -> vector<8x16xf32>
    %c0_9 = arith.constant 0 : index
    %c0_10 = arith.constant 0 : index
    %12 = vector.load %arg4[%c0_9, %c0_10] : memref<1x16xf32, #tpu.memory_space<vmem>>, vector<1x16xf32>
    %13 = vector.broadcast %12 : vector<1x16xf32> to vector<8x16xf32>
    %14 = arith.addf %11, %13 : vector<8x16xf32>
    %c0_11 = arith.constant 0 : index
    %c0_12 = arith.constant 0 : index
    %15 = vector.load %arg5[%c0_11, %c0_12] : memref<8x16xf32, #tpu.memory_space<vmem>>, vector<8x16xf32>
    tpu.vector_store %arg5[%c0_11, %c0_12], %14 {strides = array<i32>} : memref<8x16xf32, #tpu.memory_space<vmem>>, vector<8x16xf32>,
    return
  }
}

</mosaic_0001>

<llo_original>
// kernel: tpu_custom_call.1
$region0: #{tpu_custom_call.1}
  #allocation0 [shape = 'u32[]', space=smem, size = 0x4, offset = 0x4, fixed_abs, tag = 'smem constant byte address 0x4 - core index']
  #allocation1 [shape = 'u32[144,128]{1,0:T(1,128)}', space=vmem, size = 0x12000, scoped, tag = 'internal scratch']
  %s0 = inlined_call_operand.vmem [shape: f32[8,32], index: 0, kind: input, shape index: {}]
  %s1 = inlined_call_operand.vmem [shape: bf16[32,128], index: 1, kind: input, shape index: {}]
  %s2 = inlined_call_operand.vmem [shape: f32[1,128], index: 2, kind: input, shape index: {}]
  %s3 = inlined_call_operand.vmem [shape: bf16[128,16], index: 3, kind: input, shape index: {}]
  %s4 = inlined_call_operand.vmem [shape: f32[1,16], index: 4, kind: input, shape index: {}]
  %s5 = inlined_call_operand.hbm [shape: f32[8,16], index: 5, kind: output, shape index: {}]
  %s6 = sld [smem:[#allocation0]]
  $region30: #{tpu_custom_call.1} parent=0
    _
  %s8 = ssub.s32 1, %s6
  %s9 = scalar_select 0, %s8, %s6
  $region1: #{tpu_custom_call.1} parent=0
    #allocation2 [shape = 'u8[4096]{0}', space=vmem, size = 0x1000, scoped, tag = 'output window, operand 0, single buffered']
    #allocation3 [shape = 's32[1]{0}', space=sflag, size = 0x4, scoped, tag = 'scoped memory for tpu_custom_call.1']
    %10 = vsyncpa [#allocation3], 0
    // Predicated region
    $region2: #{tpu_custom_call.1} parent=1 // pred_check
      _
    $region3: #{tpu_custom_call.1} parent=1 // pred_check_branch
      %12 = sbr.rel (0) target = $region5
    $region4: #{tpu_custom_call.1} parent=1 // pred_region
      _
    $region5: #{tpu_custom_call.1} parent=1 // pred_fallthru
      _
    // Predicated region
    $region6: #{tpu_custom_call.1} parent=1 // pred_check
      _
    $region7: #{tpu_custom_call.1} parent=1 // pred_check_branch
      %14 = sbr.rel (0) target = $region9
    $region8: #{tpu_custom_call.1} parent=1 // pred_region
      _
    $region9: #{tpu_custom_call.1} parent=1 // pred_fallthru
      _
    // Predicated region
    $region10: #{tpu_custom_call.1} parent=1 // pred_check
      _
    $region11: #{tpu_custom_call.1} parent=1 // pred_check_branch
      %16 = sbr.rel (0) target = $region13
    $region12: #{tpu_custom_call.1} parent=1 // pred_region
      _
    $region13: #{tpu_custom_call.1} parent=1 // pred_fallthru
      _
    // Predicated region
    $region14: #{tpu_custom_call.1} parent=1 // pred_check
      _
    $region15: #{tpu_custom_call.1} parent=1 // pred_check_branch
      %18 = sbr.rel (0) target = $region17
    $region16: #{tpu_custom_call.1} parent=1 // pred_region
      _
    $region17: #{tpu_custom_call.1} parent=1 // pred_fallthru
      _
    // Predicated region
    $region18: #{tpu_custom_call.1} parent=1 // pred_check
      _
    $region19: #{tpu_custom_call.1} parent=1 // pred_check_branch
      %20 = sbr.rel (0) target = $region21
    $region20: #{tpu_custom_call.1} parent=1 // pred_region
      _
    $region21: #{tpu_custom_call.1} parent=1 // pred_fallthru
      _
    %v22 = vld [vmem:[%s0] sm:$0xff]
    %v23 = vpack.c.bf16 %v22, %v22
    %v24 = vld [vmem:[%s1] sm:$0xf]
    %v25 = vld [vmem:[%s1 + $0x4] sm:$0xf]
    %v26 = vld [vmem:[%s1 + $0x8] sm:$0xf]
    %v27 = vld [vmem:[%s1 + $0xc] sm:$0xf]
    %v28 = vld [vmem:[%s2] sm:$0x1]
    %v30 = vlaneseq
    %v31 = vshrl.u32 %v30, 7
    %v32 = vsub.s32 0, %v31
    %v33 = vrot.slane %v28, %v32
    %v39 = vunpack.c.l.b16 %v24
    %v40 = vunpack.c.l.b16 %v25
    %v41 = vunpack.c.l.b16 %v26
    %v42 = vunpack.c.l.b16 %v27
    %v43 = vpack.c.b16 %v40, %v39
    %v44 = vpack.c.b16 %v42, %v41
    %vm47 = vcmask 261120
    %v49 = vsel %vm47, %v23, 0
    %51 = vmatprep.subr.bf16.mxu0 0
    %52 = vmatpush1.bf16.msra.mxu0 %v43
    %53 = vmatprep.subr.bf16.mxu0 0
    %54 = vmatpush1.bf16.msra.mxu0 %v44
    %55 = vmatprep.subr.bf16.mxu0 0
    %56 = vmatpush1.bf16.msra.mxu0 0
    %57 = vmatprep.subr.bf16.mxu0 0
    %58 = vmatpush1.bf16.msra.mxu0 0
    %59 = vmatprep.subr.bf16.mxu0 0
    %60 = vmatpush1.bf16.msra.mxu0 0
    %61 = vmatprep.subr.bf16.mxu0 0
    %62 = vmatpush1.bf16.msra.mxu0 0
    %63 = vmatprep.subr.bf16.mxu0 0
    %64 = vmatpush1.bf16.msra.mxu0 0
    %65 = vmatprep.subr.bf16.mxu0 0
    %66 = vmatpush1.bf16.msra.mxu0 0
    %67 = vmatprep.subr.bf16.mxu0 0
    %68 = vmatpush1.bf16.msra.mxu0 0
    %69 = vmatprep.subr.bf16.mxu0 0
    %70 = vmatpush1.bf16.msra.mxu0 0
    %71 = vmatprep.subr.bf16.mxu0 0
    %72 = vmatpush1.bf16.msra.mxu0 0
    %73 = vmatprep.subr.bf16.mxu0 0
    %74 = vmatpush1.bf16.msra.mxu0 0
    %75 = vmatprep.subr.bf16.mxu0 0
    %76 = vmatpush1.bf16.msra.mxu0 0
    %77 = vmatprep.subr.bf16.mxu0 0
    %78 = vmatpush1.bf16.msra.mxu0 0
    %79 = vmatprep.subr.bf16.mxu0 0
    %80 = vmatpush1.bf16.msra.mxu0 0
    %81 = vmatprep.subr.bf16.mxu0 0
    %82 = vmatpush1.bf16.msra.mxu0 0
    %83 = vmatprep.mubr.bf16.mxu0 0
    %84 = vmatmul.mubr.bf16.gmra.mrb[0].mxu0 %v49
    %v85 = vpop.f32.mrb[0].mxu0
    %v86 = vadd.f32 %v33, %v85
    %v87 = vpop.f32.mrb[0].mxu0
    %v88 = vpop.f32.mrb[0].mxu0
    %v89 = vpop.f32.mrb[0].mxu0
    %90 = vdwg.mxu0
    %v91 = vmax.f32 %v86, 0.0
    %v92 = vpack.c.bf16 %v91, %v91
    %v93 = vld [vmem:[%s3] sm:$0xf]
    %v94 = vld [vmem:[%s3 + $0x4] sm:$0xf]
    %v95 = vld [vmem:[%s3 + $0x8] sm:$0xf]
    %v96 = vld [vmem:[%s3 + $0xc] sm:$0xf]
    %v97 = vld [vmem:[%s3 + $0x10] sm:$0xf]
    %v98 = vld [vmem:[%s3 + $0x14] sm:$0xf]
    %v99 = vld [vmem:[%s3 + $0x18] sm:$0xf]
    %v100 = vld [vmem:[%s3 + $0x1c] sm:$0xf]
    %v101 = vld [vmem:[%s3 + $0x20] sm:$0xf]
    %v102 = vld [vmem:[%s3 + $0x24] sm:$0xf]
    %v103 = vld [vmem:[%s3 + $0x28] sm:$0xf]
    %v104 = vld [vmem:[%s3 + $0x2c] sm:$0xf]
    %v105 = vld [vmem:[%s3 + $0x30] sm:$0xf]
    %v106 = vld [vmem:[%s3 + $0x34] sm:$0xf]
    %v107 = vld [vmem:[%s3 + $0x38] sm:$0xf]
    %v108 = vld [vmem:[%s3 + $0x3c] sm:$0xf]
    %v109 = vld [vmem:[%s4] sm:$0x1]
    %v111 = vlaneseq
    %v112 = vshrl.u32 %v111, 7
    %v113 = vsub.s32 0, %v112
    %v114 = vrot.slane %v109, %v113
    %v132 = vunpack.c.l.b16 %v93
    %v133 = vunpack.c.l.b16 %v94
    %v134 = vunpack.c.l.b16 %v95
    %v135 = vunpack.c.l.b16 %v96
    %v136 = vunpack.c.l.b16 %v97
    %v137 = vunpack.c.l.b16 %v98
    %v138 = vunpack.c.l.b16 %v99
    %v139 = vunpack.c.l.b16 %v100
    %v140 = vunpack.c.l.b16 %v101
    %v141 = vunpack.c.l.b16 %v102
    %v142 = vunpack.c.l.b16 %v103
    %v143 = vunpack.c.l.b16 %v104
    %v144 = vunpack.c.l.b16 %v105
    %v145 = vunpack.c.l.b16 %v106
    %v146 = vunpack.c.l.b16 %v107
    %v147 = vunpack.c.l.b16 %v108
    %v148 = vpack.c.b16 %v133, %v132
    %v149 = vpack.c.b16 %v135, %v134
    %v150 = vpack.c.b16 %v137, %v136
    %v151 = vpack.c.b16 %v139, %v138
    %v152 = vpack.c.b16 %v141, %v140
    %v153 = vpack.c.b16 %v143, %v142
    %v154 = vpack.c.b16 %v145, %v144
    %v155 = vpack.c.b16 %v147, %v146
    %164 = vmatprep.subr.bf16.mxu0 0
    %165 = vmatpush1.bf16.msra.mxu0 %v148
    %166 = vmatprep.subr.bf16.mxu0 0
    %167 = vmatpush1.bf16.msra.mxu0 %v149
    %168 = vmatprep.subr.bf16.mxu0 0
    %169 = vmatpush1.bf16.msra.mxu0 %v150
    %170 = vmatprep.subr.bf16.mxu0 0
    %171 = vmatpush1.bf16.msra.mxu0 %v151
    %172 = vmatprep.subr.bf16.mxu0 0
    %173 = vmatpush1.bf16.msra.mxu0 %v152
    %174 = vmatprep.subr.bf16.mxu0 0
    %175 = vmatpush1.bf16.msra.mxu0 %v153
    %176 = vmatprep.subr.bf16.mxu0 0
    %177 = vmatpush1.bf16.msra.mxu0 %v154
    %178 = vmatprep.subr.bf16.mxu0 0
    %179 = vmatpush1.bf16.msra.mxu0 %v155
    %180 = vmatprep.subr.bf16.mxu0 0
    %181 = vmatpush1.bf16.msra.mxu0 0
    %182 = vmatprep.subr.bf16.mxu0 0
    %183 = vmatpush1.bf16.msra.mxu0 0
    %184 = vmatprep.subr.bf16.mxu0 0
    %185 = vmatpush1.bf16.msra.mxu0 0
    %186 = vmatprep.subr.bf16.mxu0 0
    %187 = vmatpush1.bf16.msra.mxu0 0
    %188 = vmatprep.subr.bf16.mxu0 0
    %189 = vmatpush1.bf16.msra.mxu0 0
    %190 = vmatprep.subr.bf16.mxu0 0
    %191 = vmatpush1.bf16.msra.mxu0 0
    %192 = vmatprep.subr.bf16.mxu0 0
    %193 = vmatpush1.bf16.msra.mxu0 0
    %194 = vmatprep.subr.bf16.mxu0 0
    %195 = vmatpush1.bf16.msra.mxu0 0
    %196 = vmatprep.mubr.bf16.mxu0 0
    %197 = vmatmul.mubr.bf16.gmra.mrb[0].mxu0 %v92
    %v198 = vpop.f32.mrb[0].mxu0
    %v199 = vadd.f32 %v114, %v198
    %v200 = vpop.f32.mrb[0].mxu0
    %v201 = vpop.f32.mrb[0].mxu0
    %v202 = vpop.f32.mrb[0].mxu0
    %203 = vdwg.mxu0
    %vm204 = vcmask 130048
    %205 = vst.msk [vmem:[#allocation2] sm:$0xff] %vm204, %v199
    // Predicated region
    $region22: #{tpu_custom_call.1} parent=1 // pred_check
      _
    $region23: #{tpu_custom_call.1} parent=1 // pred_check_branch
      %207 = sbr.rel (0) target = $region25
    $region24: #{tpu_custom_call.1} parent=1 // pred_region
      %s209 = ssub.s32 128, 128
      %210 = vsyncadd [#allocation3], %s209
      %s212 = sshll.u32 [#allocation2], 4
      %s213 = int_to_ptr.vmem [resolvable:$true] %s212
      %215 = dma.vmem_to_hbm [thread:$0]  %s213, 128, %s5, [#allocation3]
    $region25: #{tpu_custom_call.1} parent=1 // pred_fallthru
      _
    // Predicated region
    $region26: #{tpu_custom_call.1} parent=1 // pred_check
      _
    $region27: #{tpu_custom_call.1} parent=1 // pred_check_branch
      %217 = sbr.rel (0) target = $region29
    $region28: #{tpu_custom_call.1} parent=1 // pred_region
      %218 = dma.done [#allocation3], 128
    $region29: #{tpu_custom_call.1} parent=1 // pred_fallthru
      _
    %219 = vsyncpa [#allocation3], 1

</llo_original>
